<compile_context>
chip_gen: v5e
topology: v5e:2x2
jax: 0.10.0
libtpu: 0.0.40
codegen_flags: <defaults>
</compile_context>

<pallas_src>
import functools
import math

import jax
import jax.numpy as jnp
from jax.experimental import pallas as pl
from jax.experimental.pallas import tpu as pltpu

BN_EPS = 1e-5


def _round_up(x, m):
    return (x + m - 1) // m * m


def _largest_divisor(n, limit, multiple=1):
    """Largest d <= limit with d % multiple == 0 and n % d == 0."""
    best = None
    d = multiple
    limit = min(limit, n)
    while d <= limit:
        if n % d == 0:
            best = d
        d += multiple
    return best


# ---------------------------------------------------------------------------
# Pass 1: BatchNorm2d batch statistics (per-channel sum and sum-of-squares).
# Grid = (n_slices, steps).  Each slice accumulates its row tiles into an
# (8, C) VMEM scratch (VPU adds only) and reduces to a (1, C) output once at
# its last step.  The slice axis is "parallel" (v7x 2-TC sharding).
# ---------------------------------------------------------------------------
def _bn_stats_kernel(x_ref, sum_ref, sq_ref, acc_s_ref, acc_q_ref):
    step = pl.program_id(1)

    @pl.when(step == 0)
    def _():
        acc_s_ref[...] = jnp.zeros_like(acc_s_ref)
        acc_q_ref[...] = jnp.zeros_like(acc_q_ref)

    x = x_ref[...].astype(jnp.float32)                     # (tm, C)
    xg = x.reshape(x.shape[0] // 8, 8, x.shape[1])         # tile-aligned split
    acc_s_ref[...] += jnp.sum(xg, axis=0)                  # VPU adds only
    acc_q_ref[...] += jnp.sum(xg * xg, axis=0)

    @pl.when(step == pl.num_programs(1) - 1)
    def _():
        # Cross-sublane reduce only once per slice (keeps XLU out of hot loop).
        sum_ref[...] = jnp.sum(acc_s_ref[...], axis=0, keepdims=True)
        sq_ref[...] = jnp.sum(acc_q_ref[...], axis=0, keepdims=True)


def bn_batch_stats(x2d, *, tile_m=1024):
    """Per-channel (sum, sum_sq) partials of an (M, C) array, f32 accumulation.

    Returns two (n_slices, C) arrays; the caller sums over the slice axis.
    Zero padding of M (if ever needed) is harmless for both sums.
    """
    m, c = x2d.shape
    m8 = _round_up(m, 8)
    if m8 != m:                                            # rare, tiny/odd M
        x2d = jnp.pad(x2d, ((0, m8 - m), (0, 0)))

    # Cap the tile by bytes so 2x double-buffered input fits v5e's 16 MiB
    # scoped VMEM default even for large C.
    row_bytes = c * x2d.dtype.itemsize
    byte_cap = max(8, (4 << 20) // max(1, row_bytes) // 8 * 8)
    tm = _largest_divisor(m8, min(tile_m, byte_cap), multiple=8)

    grid_total = m8 // tm
    n_slices = 2 if (grid_total % 2 == 0 and grid_total >= 2) else 1
    steps = grid_total // n_slices

    s, sq = pl.pallas_call(
        _bn_stats_kernel,
        out_shape=(jax.ShapeDtypeStruct((n_slices, c), jnp.float32),
                   jax.ShapeDtypeStruct((n_slices, c), jnp.float32)),
        grid=(n_slices, steps),
        in_specs=[pl.BlockSpec((tm, c), lambda p, i: (p * steps + i, 0))],
        out_specs=(pl.BlockSpec((1, c), lambda p, i: (p, 0)),
                   pl.BlockSpec((1, c), lambda p, i: (p, 0))),
        scratch_shapes=[pltpu.VMEM((8, c), jnp.float32),
                        pltpu.VMEM((8, c), jnp.float32)],
        compiler_params=pltpu.CompilerParams(
            dimension_semantics=("parallel", "arbitrary"),
            vmem_limit_bytes=32 * 1024 * 1024),
    )(x2d)
    return s, sq


# ---------------------------------------------------------------------------
# Pass 2: fused BN-affine + ReLU + AvgPool(pool) + 1x1 conv (MXU matmul).
# Input block is (tr, pool, wo, pool*C) bf16 cut from a single free reshape of
# the NHWC activation; the pool^2 phases are static slices of the block.
# ---------------------------------------------------------------------------
def _bn_relu_pool_conv_kernel(x_ref, scale_ref, shift_ref, w_ref, o_ref, *,
                              pool, c):
    tr = x_ref.shape[0]
    wo = x_ref.shape[2]
    x = x_ref[...]                                          # bf16, full block
    # Hoist the (1,C) -> (tr,wo,C) broadcasts once (JAX doesn't CSE them).
    scale = jnp.broadcast_to(scale_ref[...].reshape(1, 1, c), (tr, wo, c))
    shift = jnp.broadcast_to(shift_ref[...].reshape(1, 1, c), (tr, wo, c))

    acc = None
    for py in range(pool):                                  # static pool^2 loop
        for px in range(pool):
            v = x[:, py, :, px * c:(px + 1) * c].astype(jnp.float32)
            t = jnp.maximum(v * scale + shift, 0.0)
            acc = t if acc is None else acc + t

    # 1x1 conv == channel matmul; 1/pool^2 is already folded into w.
    y = acc.reshape(tr * wo, c).astype(jnp.bfloat16)
    out = jnp.dot(y, w_ref[...], preferred_element_type=jnp.float32)
    o_ref[...] = out.reshape(o_ref.shape)


# ------------------------------- forward -----------------------------------
def transition_layer_forward(x_nchw, params, *, reduction=0.5, stride=2,
                             stats_tile_m=1024, fused_block_bytes=2 << 20):
    # TODO(synk): reduction == 1 (pool-only, no BN/ReLU/conv) path not implemented.
    assert reduction < 1, "only the reduction < 1 branch is implemented"
    n, c, h, w = x_nchw.shape
    cout = params["weight"].shape[1]
    pool = stride if (reduction == 1 or stride > 1) else 1
    ho, wo = h // pool, w // pool

    # Single data-movement op: NCHW f32 -> NHWC bf16 (cast folded into the
    # transpose; every later read of the activation is half the bytes).
    x = jnp.transpose(x_nchw.astype(jnp.bfloat16), (0, 2, 3, 1))
    if ho * pool != h or wo * pool != w:
        x = x[:, :ho * pool, :wo * pool, :]                 # AvgPool floor crop

    # ---- pass 1: BatchNorm2d training-mode batch statistics (Pallas) ----
    m = n * (ho * pool) * (wo * pool)
    s, sq = bn_batch_stats(x.reshape(m, c), tile_m=stats_tile_m)
    s = jnp.sum(s, axis=0, keepdims=True)
    sq = jnp.sum(sq, axis=0, keepdims=True)
    mean = s / m
    var = sq / m - mean * mean                              # biased, as PyTorch BN
    scale = params["gamma"].reshape(1, c) * jax.lax.rsqrt(var + BN_EPS)
    shift = params["beta"].reshape(1, c) - mean * scale

    # ---- pass 2: fused affine + ReLU + AvgPool(pool) + 1x1 conv (Pallas) ----
    # Free reshape (dim grouping only): (n, ho, pool, wo, pool, c) ->
    # (n*ho, pool, wo, pool*c).  No strided views, no pads.
    r = n * ho
    x_r = x.reshape(r, pool, wo, pool * c)

    cout_pad = _round_up(cout, 128)                         # lane-dense stores
    w_scaled = params["weight"] * (1.0 / (pool * pool))     # fold 1/pool^2 into W
    w_bf16 = jnp.pad(w_scaled, ((0, 0), (0, cout_pad - cout))).astype(jnp.bfloat16)

    row_bytes = pool * wo * pool * c * 2                    # bf16 bytes per row
    tr = _largest_divisor(r, max(1, fused_block_bytes // row_bytes))

    out3d = pl.pallas_call(
        functools.partial(_bn_relu_pool_conv_kernel, pool=pool, c=c),
        out_shape=jax.ShapeDtypeStruct((r, wo, cout_pad), jnp.float32),
        grid=(r // tr,),
        in_specs=[pl.BlockSpec((tr, pool, wo, pool * c), lambda i: (i, 0, 0, 0)),
                  pl.BlockSpec((1, c), lambda i: (0, 0)),
                  pl.BlockSpec((1, c), lambda i: (0, 0)),
                  pl.BlockSpec((c, cout_pad), lambda i: (0, 0))],
        out_specs=pl.BlockSpec((tr, wo, cout_pad), lambda i: (i, 0, 0)),
        compiler_params=pltpu.CompilerParams(
            dimension_semantics=("parallel",),
            vmem_limit_bytes=32 * 1024 * 1024),
    )(x_r, scale, shift, w_bf16)

    out = out3d[:, :, :cout].reshape(n, ho, wo, cout)
    return jnp.transpose(out, (0, 3, 1, 2))                 # NHWC -> NCHW


# --------------------------- params / reference -----------------------------
def init_transition_layer(key, inplanes, reduction=0.5):
    cout = math.ceil(inplanes * reduction)
    k1, k2, k3 = jax.random.split(key, 3)
    return {
        "gamma": 1.0 + 0.1 * jax.random.normal(k1, (inplanes,), jnp.float32),
        "beta": 0.1 * jax.random.normal(k2, (inplanes,), jnp.float32),
        "weight": 0.1 * jax.random.normal(k3, (inplanes, cout), jnp.float32),
    }


def transition_layer_reference(x_nchw, params, *, reduction=0.5, stride=2):
    n, c, h, w = x_nchw.shape
    x = jnp.transpose(x_nchw, (0, 2, 3, 1)).astype(jnp.float32)
    mean = jnp.mean(x, axis=(0, 1, 2))
    var = jnp.mean((x - mean) ** 2, axis=(0, 1, 2))
    y = (x - mean) * jax.lax.rsqrt(var + BN_EPS) * params["gamma"] + params["beta"]
    y = jnp.maximum(y, 0.0)
    y = jnp.einsum("nhwc,cd->nhwd", y, params["weight"])
    if reduction == 1 or stride > 1:
        ho, wo = h // stride, w // stride
        y = y[:, :ho * stride, :wo * stride, :]
        y = y.reshape(n, ho, stride, wo, stride, -1).mean(axis=(2, 4))
    return jnp.transpose(y, (0, 3, 1, 2))


if __name__ == "__main__":
    key = jax.random.PRNGKey(0)
    pkey, xkey = jax.random.split(key)
    inplanes = 64                                       # Cout = ceil(64*0.5) = 32
    params = init_transition_layer(pkey, inplanes, reduction=0.5)
    x = jax.random.normal(xkey, (2, inplanes, 16, 16), jnp.float32)   # NCHW

    out = jax.jit(transition_layer_forward)(x, params)
    out = jax.block_until_ready(out)

    assert out.shape == (2, 32, 8, 8), out.shape
    assert bool(jnp.all(jnp.isfinite(out)))
    ref = transition_layer_reference(x, params)
    max_err = float(jnp.max(jnp.abs(out - ref)))
    assert max_err < 5e-2, max_err
    print("KERNEL_OK")
</pallas_src>

<mosaic_0001>
module attributes {stable_mosaic.version = 11 : i64} {
  func.func @_bn_stats_kernel(%arg0: i32, %arg1: i32, %arg2: memref<512x64xbf16, #tpu.memory_space<vmem>>, %arg3: memref<1x64xf32, #tpu.memory_space<vmem>>, %arg4: memref<1x64xf32, #tpu.memory_space<vmem>>, %arg5: memref<8x64xf32, #tpu.memory_space<vmem>>, %arg6: memref<8x64xf32, #tpu.memory_space<vmem>>) attributes {dimension_semantics = [#tpu.dimension_semantics<parallel>, #tpu.dimension_semantics<arbitrary>], iteration_bounds = array<i64: 1, 1>, scalar_prefetch = 0 : i64, scratch_operands = 2 : i64, tpu.core_type = #tpu.core_type<tc>, window_params = [{transform_indices = @transform_0, window_bounds = array<i64: 512, 64>}, {transform_indices = @transform_1, window_bounds = array<i64: 1, 64>}, {transform_indices = @transform_2, window_bounds = array<i64: 1, 64>}]} {
    %c0_i32 = arith.constant 0 : i32
    %0 = arith.cmpi eq, %arg1, %c0_i32 : i32
    %1 = arith.extui %0 : i1 to i32
    %c0_i32_0 = arith.constant 0 : i32
    %2 = arith.cmpi ne, %1, %c0_i32_0 : i32
    scf.if %2 {
      %cst_13 = arith.constant 0.000000e+00 : f32
      %18 = vector.broadcast %cst_13 : f32 to vector<8x64xf32>
      %c0_14 = arith.constant 0 : index
      %c0_15 = arith.constant 0 : index
      %19 = vector.load %arg5[%c0_14, %c0_15] : memref<8x64xf32, #tpu.memory_space<vmem>>, vector<8x64xf32>
      tpu.vector_store %arg5[%c0_14, %c0_15], %18 {strides = array<i32>} : memref<8x64xf32, #tpu.memory_space<vmem>>, vector<8x64xf32>,
      %cst_16 = arith.constant 0.000000e+00 : f32
      %20 = vector.broadcast %cst_16 : f32 to vector<8x64xf32>
      %c0_17 = arith.constant 0 : index
      %c0_18 = arith.constant 0 : index
      %21 = vector.load %arg6[%c0_17, %c0_18] : memref<8x64xf32, #tpu.memory_space<vmem>>, vector<8x64xf32>
      tpu.vector_store %arg6[%c0_17, %c0_18], %20 {strides = array<i32>} : memref<8x64xf32, #tpu.memory_space<vmem>>, vector<8x64xf32>,
    } else {
    }
    %c0 = arith.constant 0 : index
    %c0_1 = arith.constant 0 : index
    %3 = vector.load %arg2[%c0, %c0_1] : memref<512x64xbf16, #tpu.memory_space<vmem>>, vector<512x64xbf16>
    %4 = arith.extf %3 : vector<512x64xbf16> to vector<512x64xf32>
    %5 = vector.shape_cast %4 : vector<512x64xf32> to vector<64x8x64xf32>
    %c0_2 = arith.constant 0 : index
    %c0_3 = arith.constant 0 : index
    %6 = vector.load %arg5[%c0_2, %c0_3] : memref<8x64xf32, #tpu.memory_space<vmem>>, vector<8x64xf32>
    %cst = arith.constant dense<0.000000e+00> : vector<8x64xf32>
    %7 = vector.multi_reduction <add>, %5, %cst [0] : vector<64x8x64xf32> to vector<8x64xf32>
    %8 = arith.addf %6, %7 : vector<8x64xf32>
    %c0_4 = arith.constant 0 : index
    %c0_5 = arith.constant 0 : index
    %9 = vector.load %arg5[%c0_4, %c0_5] : memref<8x64xf32, #tpu.memory_space<vmem>>, vector<8x64xf32>
    tpu.vector_store %arg5[%c0_4, %c0_5], %8 {strides = array<i32>} : memref<8x64xf32, #tpu.memory_space<vmem>>, vector<8x64xf32>,
    %c0_6 = arith.constant 0 : index
    %c0_7 = arith.constant 0 : index
    %10 = vector.load %arg6[%c0_6, %c0_7] : memref<8x64xf32, #tpu.memory_space<vmem>>, vector<8x64xf32>
    %11 = arith.mulf %5, %5 : vector<64x8x64xf32>
    %cst_8 = arith.constant dense<0.000000e+00> : vector<8x64xf32>
    %12 = vector.multi_reduction <add>, %11, %cst_8 [0] : vector<64x8x64xf32> to vector<8x64xf32>
    %13 = arith.addf %10, %12 : vector<8x64xf32>
    %c0_9 = arith.constant 0 : index
    %c0_10 = arith.constant 0 : index
    %14 = vector.load %arg6[%c0_9, %c0_10] : memref<8x64xf32, #tpu.memory_space<vmem>>, vector<8x64xf32>
    tpu.vector_store %arg6[%c0_9, %c0_10], %13 {strides = array<i32>} : memref<8x64xf32, #tpu.memory_space<vmem>>, vector<8x64xf32>,
    %c0_i32_11 = arith.constant 0 : i32
    %15 = arith.cmpi eq, %arg1, %c0_i32_11 : i32
    %16 = arith.extui %15 : i1 to i32
    %c0_i32_12 = arith.constant 0 : i32
    %17 = arith.cmpi ne, %16, %c0_i32_12 : i32
    scf.if %17 {
      %c0_13 = arith.constant 0 : index
      %c0_14 = arith.constant 0 : index
      %18 = vector.load %arg5[%c0_13, %c0_14] : memref<8x64xf32, #tpu.memory_space<vmem>>, vector<8x64xf32>
      %cst_15 = arith.constant dense<0.000000e+00> : vector<64xf32>
      %19 = vector.multi_reduction <add>, %18, %cst_15 [0] : vector<8x64xf32> to vector<64xf32>
      %20 = vector.shape_cast %19 : vector<64xf32> to vector<1x64xf32>
      %c0_16 = arith.constant 0 : index
      %c0_17 = arith.constant 0 : index
      %21 = vector.load %arg3[%c0_16, %c0_17] : memref<1x64xf32, #tpu.memory_space<vmem>>, vector<1x64xf32>
      tpu.vector_store %arg3[%c0_16, %c0_17], %20 {strides = array<i32>} : memref<1x64xf32, #tpu.memory_space<vmem>>, vector<1x64xf32>,
      %c0_18 = arith.constant 0 : index
      %c0_19 = arith.constant 0 : index
      %22 = vector.load %arg6[%c0_18, %c0_19] : memref<8x64xf32, #tpu.memory_space<vmem>>, vector<8x64xf32>
      %cst_20 = arith.constant dense<0.000000e+00> : vector<64xf32>
      %23 = vector.multi_reduction <add>, %22, %cst_20 [0] : vector<8x64xf32> to vector<64xf32>
      %24 = vector.shape_cast %23 : vector<64xf32> to vector<1x64xf32>
      %c0_21 = arith.constant 0 : index
      %c0_22 = arith.constant 0 : index
      %25 = vector.load %arg4[%c0_21, %c0_22] : memref<1x64xf32, #tpu.memory_space<vmem>>, vector<1x64xf32>
      tpu.vector_store %arg4[%c0_21, %c0_22], %24 {strides = array<i32>} : memref<1x64xf32, #tpu.memory_space<vmem>>, vector<1x64xf32>,
    } else {
    }
    return
  }
  func.func @transform_0(%arg0: i32, %arg1: i32) -> (i32, i32) {
    %c1_i32 = arith.constant 1 : i32
    %0 = arith.muli %arg0, %c1_i32 : i32
    %1 = arith.addi %0, %arg1 : i32
    %c0_i32 = arith.constant 0 : i32
    %c0_i32_0 = arith.constant 0 : i32
    return %1, %c0_i32 : i32, i32
  }
  func.func @transform_1(%arg0: i32, %arg1: i32) -> (i32, i32) {
    %c0_i32 = arith.constant 0 : i32
    %c0_i32_0 = arith.constant 0 : i32
    return %arg0, %c0_i32 : i32, i32
  }
  func.func @transform_2(%arg0: i32, %arg1: i32) -> (i32, i32) {
    %c0_i32 = arith.constant 0 : i32
    %c0_i32_0 = arith.constant 0 : i32
    return %arg0, %c0_i32 : i32, i32
  }
}

module attributes {stable_mosaic.version = 11 : i64} {
  func.func @_bn_relu_pool_conv_kernel(%arg0: i32, %arg1: memref<16x2x8x128xbf16, #tpu.memory_space<vmem>>, %arg2: memref<1x64xf32, #tpu.memory_space<vmem>>, %arg3: memref<1x64xf32, #tpu.memory_space<vmem>>, %arg4: memref<64x128xbf16, #tpu.memory_space<vmem>>, %arg5: memref<16x8x128xf32, #tpu.memory_space<vmem>>) attributes {dimension_semantics = [#tpu.dimension_semantics<parallel>], iteration_bounds = array<i64: 1>, scalar_prefetch = 0 : i64, scratch_operands = 0 : i64, tpu.core_type = #tpu.core_type<tc>, window_params = [{transform_indices = @transform_0, window_bounds = array<i64: 16, 2, 8, 128>}, {pipeline_mode = #tpu.pipeline_mode<synchronous>, transform_indices = @transform_1, window_bounds = array<i64: 1, 64>}, {pipeline_mode = #tpu.pipeline_mode<synchronous>, transform_indices = @transform_2, window_bounds = array<i64: 1, 64>}, {pipeline_mode = #tpu.pipeline_mode<synchronous>, transform_indices = @transform_3, window_bounds = array<i64: 64, 128>}, {transform_indices = @transform_4, window_bounds = array<i64: 16, 8, 128>}]} {
    %c0 = arith.constant 0 : index
    %c0_0 = arith.constant 0 : index
    %c0_1 = arith.constant 0 : index
    %c0_2 = arith.constant 0 : index
    %0 = vector.load %arg1[%c0, %c0_0, %c0_1, %c0_2] : memref<16x2x8x128xbf16, #tpu.memory_space<vmem>>, vector<16x2x8x128xbf16>
    %c0_3 = arith.constant 0 : index
    %c0_4 = arith.constant 0 : index
    %1 = vector.load %arg2[%c0_3, %c0_4] : memref<1x64xf32, #tpu.memory_space<vmem>>, vector<1x64xf32>
    %2 = vector.shape_cast %1 : vector<1x64xf32> to vector<1x1x64xf32>
    %3 = vector.shape_cast %2 : vector<1x1x64xf32> to vector<1x1x64xf32>
    %4 = vector.broadcast %3 : vector<1x1x64xf32> to vector<16x8x64xf32>
    %c0_5 = arith.constant 0 : index
    %c0_6 = arith.constant 0 : index
    %5 = vector.load %arg3[%c0_5, %c0_6] : memref<1x64xf32, #tpu.memory_space<vmem>>, vector<1x64xf32>
    %6 = vector.shape_cast %5 : vector<1x64xf32> to vector<1x1x64xf32>
    %7 = vector.shape_cast %6 : vector<1x1x64xf32> to vector<1x1x64xf32>
    %8 = vector.broadcast %7 : vector<1x1x64xf32> to vector<16x8x64xf32>
    %9 = vector.extract_strided_slice %0 {offsets = [0, 0, 0, 0], sizes = [16, 1, 8, 64], strides = [1, 1, 1, 1]} : vector<16x2x8x128xbf16> to vector<16x1x8x64xbf16>
    %10 = vector.shape_cast %9 : vector<16x1x8x64xbf16> to vector<16x8x64xbf16>
    %11 = arith.extf %10 : vector<16x8x64xbf16> to vector<16x8x64xf32>
    %12 = arith.mulf %11, %4 : vector<16x8x64xf32>
    %13 = arith.addf %12, %8 : vector<16x8x64xf32>
    %cst = arith.constant 0.000000e+00 : f32
    %14 = vector.broadcast %cst : f32 to vector<16x8x64xf32>
    %15 = arith.maximumf %13, %14 : vector<16x8x64xf32>
    %16 = vector.extract_strided_slice %0 {offsets = [0, 0, 0, 64], sizes = [16, 1, 8, 64], strides = [1, 1, 1, 1]} : vector<16x2x8x128xbf16> to vector<16x1x8x64xbf16>
    %17 = vector.shape_cast %16 : vector<16x1x8x64xbf16> to vector<16x8x64xbf16>
    %18 = arith.extf %17 : vector<16x8x64xbf16> to vector<16x8x64xf32>
    %19 = arith.mulf %18, %4 : vector<16x8x64xf32>
    %20 = arith.addf %19, %8 : vector<16x8x64xf32>
    %cst_7 = arith.constant 0.000000e+00 : f32
    %21 = vector.broadcast %cst_7 : f32 to vector<16x8x64xf32>
    %22 = arith.maximumf %20, %21 : vector<16x8x64xf32>
    %23 = arith.addf %15, %22 : vector<16x8x64xf32>
    %24 = vector.extract_strided_slice %0 {offsets = [0, 1, 0, 0], sizes = [16, 1, 8, 64], strides = [1, 1, 1, 1]} : vector<16x2x8x128xbf16> to vector<16x1x8x64xbf16>
    %25 = vector.shape_cast %24 : vector<16x1x8x64xbf16> to vector<16x8x64xbf16>
    %26 = arith.extf %25 : vector<16x8x64xbf16> to vector<16x8x64xf32>
    %27 = arith.mulf %26, %4 : vector<16x8x64xf32>
    %28 = arith.addf %27, %8 : vector<16x8x64xf32>
    %cst_8 = arith.constant 0.000000e+00 : f32
    %29 = vector.broadcast %cst_8 : f32 to vector<16x8x64xf32>
    %30 = arith.maximumf %28, %29 : vector<16x8x64xf32>
    %31 = arith.addf %23, %30 : vector<16x8x64xf32>
    %32 = vector.extract_strided_slice %0 {offsets = [0, 1, 0, 64], sizes = [16, 1, 8, 64], strides = [1, 1, 1, 1]} : vector<16x2x8x128xbf16> to vector<16x1x8x64xbf16>
    %33 = vector.shape_cast %32 : vector<16x1x8x64xbf16> to vector<16x8x64xbf16>
    %34 = arith.extf %33 : vector<16x8x64xbf16> to vector<16x8x64xf32>
    %35 = arith.mulf %34, %4 : vector<16x8x64xf32>
    %36 = arith.addf %35, %8 : vector<16x8x64xf32>
    %cst_9 = arith.constant 0.000000e+00 : f32
    %37 = vector.broadcast %cst_9 : f32 to vector<16x8x64xf32>
    %38 = arith.maximumf %36, %37 : vector<16x8x64xf32>
    %39 = arith.addf %31, %38 : vector<16x8x64xf32>
    %40 = vector.shape_cast %39 : vector<16x8x64xf32> to vector<128x64xf32>
    %41 = arith.truncf %40 : vector<128x64xf32> to vector<128x64xbf16>
    %c0_10 = arith.constant 0 : index
    %c0_11 = arith.constant 0 : index
    %42 = vector.load %arg4[%c0_10, %c0_11] : memref<64x128xbf16, #tpu.memory_space<vmem>>, vector<64x128xbf16>
    %cst_12 = arith.constant dense<0.000000e+00> : vector<128x128xf32>
    %43 = tpu.matmul %41, %42, %cst_12 {dimension_numbers = #tpu.dot_dimension_numbers<[1], [0], [0], [1], [0, 0, 1, 1], [], []>} : vector<128x64xbf16>, vector<64x128xbf16>, vector<128x128xf32> -> vector<128x128xf32>
    %44 = vector.shape_cast %43 : vector<128x128xf32> to vector<16x8x128xf32>
    %c0_13 = arith.constant 0 : index
    %c0_14 = arith.constant 0 : index
    %c0_15 = arith.constant 0 : index
    %45 = vector.load %arg5[%c0_13, %c0_14, %c0_15] : memref<16x8x128xf32, #tpu.memory_space<vmem>>, vector<16x8x128xf32>
    tpu.vector_store %arg5[%c0_13, %c0_14, %c0_15], %44 {strides = array<i32>} : memref<16x8x128xf32, #tpu.memory_space<vmem>>, vector<16x8x128xf32>,
    return
  }
  func.func @transform_0(%arg0: i32) -> (i32, i32, i32, i32) {
    %c0_i32 = arith.constant 0 : i32
    %c0_i32_0 = arith.constant 0 : i32
    %c0_i32_1 = arith.constant 0 : i32
    %c0_i32_2 = arith.constant 0 : i32
    return %arg0, %c0_i32, %c0_i32_0, %c0_i32_1 : i32, i32, i32, i32
  }
  func.func @transform_1(%arg0: i32) -> (i32, i32) {
    %c0_i32 = arith.constant 0 : i32
    %c0_i32_0 = arith.constant 0 : i32
    %c0_i32_1 = arith.constant 0 : i32
    return %c0_i32, %c0_i32_0 : i32, i32
  }
  func.func @transform_2(%arg0: i32) -> (i32, i32) {
    %c0_i32 = arith.constant 0 : i32
    %c0_i32_0 = arith.constant 0 : i32
    %c0_i32_1 = arith.constant 0 : i32
    return %c0_i32, %c0_i32_0 : i32, i32
  }
  func.func @transform_3(%arg0: i32) -> (i32, i32) {
    %c0_i32 = arith.constant 0 : i32
    %c0_i32_0 = arith.constant 0 : i32
    %c0_i32_1 = arith.constant 0 : i32
    return %c0_i32, %c0_i32_0 : i32, i32
  }
  func.func @transform_4(%arg0: i32) -> (i32, i32, i32) {
    %c0_i32 = arith.constant 0 : i32
    %c0_i32_0 = arith.constant 0 : i32
    %c0_i32_1 = arith.constant 0 : i32
    return %arg0, %c0_i32, %c0_i32_0 : i32, i32, i32
  }
}

</mosaic_0001>

<llo_original>
// kernel: transition_layer_forward.3
$region0: #{transition_layer_forward.3}
  #allocation0 [shape = 'u32[]', space=smem, size = 0x4, offset = 0x4, fixed_abs, tag = 'smem constant byte address 0x4 - core index']
  #allocation1 [shape = 'u32[72,128]{1,0:T(1,128)}', space=vmem, size = 0x9000, scoped, tag = 'internal scratch']
  %s0 = inlined_call_operand.vmem [shape: bf16[16,2,8,128], index: 0, kind: input, shape index: {}]
  %s1 = inlined_call_operand.vmem [shape: f32[1,64], index: 1, kind: input, shape index: {}]
  %s2 = inlined_call_operand.vmem [shape: f32[1,64], index: 2, kind: input, shape index: {}]
  %s3 = inlined_call_operand.vmem [shape: bf16[64,128], index: 3, kind: input, shape index: {}]
  %s4 = inlined_call_operand.hbm [shape: f32[16,8,128], index: 4, kind: output, shape index: {}]
  %s5 = sld [smem:[#allocation0]]
  $region26: #{transition_layer_forward.3} parent=0
    _
  %s7 = ssub.s32 1, %s5
  %s8 = scalar_select 0, %s7, %s5
  $region1: #{transition_layer_forward.3} parent=0
    #allocation2 [shape = 'u8[65536]{0}', space=vmem, size = 0x10000, scoped, tag = 'output window, operand 0, single buffered']
    #allocation3 [shape = 's32[1]{0}', space=sflag, size = 0x4, scoped, tag = 'scoped memory for transition_layer_forward.3']
    %9 = vsyncpa [#allocation3], 0
    // Predicated region
    $region2: #{transition_layer_forward.3} parent=1 // pred_check
      _
    $region3: #{transition_layer_forward.3} parent=1 // pred_check_branch
      %11 = sbr.rel (0) target = $region5
    $region4: #{transition_layer_forward.3} parent=1 // pred_region
      _
    $region5: #{transition_layer_forward.3} parent=1 // pred_fallthru
      _
    // Predicated region
    $region6: #{transition_layer_forward.3} parent=1 // pred_check
      _
    $region7: #{transition_layer_forward.3} parent=1 // pred_check_branch
      %13 = sbr.rel (0) target = $region9
    $region8: #{transition_layer_forward.3} parent=1 // pred_region
      _
    $region9: #{transition_layer_forward.3} parent=1 // pred_fallthru
      _
    // Predicated region
    $region10: #{transition_layer_forward.3} parent=1 // pred_check
      _
    $region11: #{transition_layer_forward.3} parent=1 // pred_check_branch
      %15 = sbr.rel (0) target = $region13
    $region12: #{transition_layer_forward.3} parent=1 // pred_region
      _
    $region13: #{transition_layer_forward.3} parent=1 // pred_fallthru
      _
    // Predicated region
    $region14: #{transition_layer_forward.3} parent=1 // pred_check
      _
    $region15: #{transition_layer_forward.3} parent=1 // pred_check_branch
      %17 = sbr.rel (0) target = $region17
    $region16: #{transition_layer_forward.3} parent=1 // pred_region
      _
    $region17: #{transition_layer_forward.3} parent=1 // pred_fallthru
      _
    %v19 = vld [vmem:[%s0] sm:$0xf]
    %v20 = vld [vmem:[%s0 + $0x4] sm:$0xf]
    %v21 = vld [vmem:[%s0 + $0x8] sm:$0xf]
    %v22 = vld [vmem:[%s0 + $0xc] sm:$0xf]
    %v23 = vld [vmem:[%s0 + $0x10] sm:$0xf]
    %v24 = vld [vmem:[%s0 + $0x14] sm:$0xf]
    %v25 = vld [vmem:[%s0 + $0x18] sm:$0xf]
    %v26 = vld [vmem:[%s0 + $0x1c] sm:$0xf]
    %v27 = vld [vmem:[%s0 + $0x20] sm:$0xf]
    %v28 = vld [vmem:[%s0 + $0x24] sm:$0xf]
    %v29 = vld [vmem:[%s0 + $0x28] sm:$0xf]
    %v30 = vld [vmem:[%s0 + $0x2c] sm:$0xf]
    %v31 = vld [vmem:[%s0 + $0x30] sm:$0xf]
    %v32 = vld [vmem:[%s0 + $0x34] sm:$0xf]
    %v33 = vld [vmem:[%s0 + $0x38] sm:$0xf]
    %v34 = vld [vmem:[%s0 + $0x3c] sm:$0xf]
    %v35 = vld [vmem:[%s0 + $0x40] sm:$0xf]
    %v36 = vld [vmem:[%s0 + $0x44] sm:$0xf]
    %v37 = vld [vmem:[%s0 + $0x48] sm:$0xf]
    %v38 = vld [vmem:[%s0 + $0x4c] sm:$0xf]
    %v39 = vld [vmem:[%s0 + $0x50] sm:$0xf]
    %v40 = vld [vmem:[%s0 + $0x54] sm:$0xf]
    %v41 = vld [vmem:[%s0 + $0x58] sm:$0xf]
    %v42 = vld [vmem:[%s0 + $0x5c] sm:$0xf]
    %v43 = vld [vmem:[%s0 + $0x60] sm:$0xf]
    %v44 = vld [vmem:[%s0 + $0x64] sm:$0xf]
    %v45 = vld [vmem:[%s0 + $0x68] sm:$0xf]
    %v46 = vld [vmem:[%s0 + $0x6c] sm:$0xf]
    %v47 = vld [vmem:[%s0 + $0x70] sm:$0xf]
    %v48 = vld [vmem:[%s0 + $0x74] sm:$0xf]
    %v49 = vld [vmem:[%s0 + $0x78] sm:$0xf]
    %v50 = vld [vmem:[%s0 + $0x7c] sm:$0xf]
    %v51 = vld [vmem:[%s1] sm:$0x1]
    %v53 = vperm.slane %v51, 0
    %v55 = vld [vmem:[%s2] sm:$0x1]
    %v57 = vperm.slane %v55, 0
    %v59 = vunpack.c.l.bf16 %v19
    %v60 = vunpack.c.l.bf16 %v21
    %v61 = vunpack.c.l.bf16 %v23
    %v62 = vunpack.c.l.bf16 %v25
    %v63 = vunpack.c.l.bf16 %v27
    %v64 = vunpack.c.l.bf16 %v29
    %v65 = vunpack.c.l.bf16 %v31
    %v66 = vunpack.c.l.bf16 %v33
    %v67 = vunpack.c.l.bf16 %v35
    %v68 = vunpack.c.l.bf16 %v37
    %v69 = vunpack.c.l.bf16 %v39
    %v70 = vunpack.c.l.bf16 %v41
    %v71 = vunpack.c.l.bf16 %v43
    %v72 = vunpack.c.l.bf16 %v45
    %v73 = vunpack.c.l.bf16 %v47
    %v74 = vunpack.c.l.bf16 %v49
    %v75 = vmul.f32 %v59, %v53
    %v76 = vmul.f32 %v60, %v53
    %v77 = vmul.f32 %v61, %v53
    %v78 = vmul.f32 %v62, %v53
    %v79 = vmul.f32 %v63, %v53
    %v80 = vmul.f32 %v64, %v53
    %v81 = vmul.f32 %v65, %v53
    %v82 = vmul.f32 %v66, %v53
    %v83 = vmul.f32 %v67, %v53
    %v84 = vmul.f32 %v68, %v53
    %v85 = vmul.f32 %v69, %v53
    %v86 = vmul.f32 %v70, %v53
    %v87 = vmul.f32 %v71, %v53
    %v88 = vmul.f32 %v72, %v53
    %v89 = vmul.f32 %v73, %v53
    %v90 = vmul.f32 %v74, %v53
    %v91 = vadd.f32 %v75, %v57
    %v92 = vadd.f32 %v76, %v57
    %v93 = vadd.f32 %v77, %v57
    %v94 = vadd.f32 %v78, %v57
    %v95 = vadd.f32 %v79, %v57
    %v96 = vadd.f32 %v80, %v57
    %v97 = vadd.f32 %v81, %v57
    %v98 = vadd.f32 %v82, %v57
    %v99 = vadd.f32 %v83, %v57
    %v100 = vadd.f32 %v84, %v57
    %v101 = vadd.f32 %v85, %v57
    %v102 = vadd.f32 %v86, %v57
    %v103 = vadd.f32 %v87, %v57
    %v104 = vadd.f32 %v88, %v57
    %v105 = vadd.f32 %v89, %v57
    %v106 = vadd.f32 %v90, %v57
    %v107 = vmax.f32 %v91, 0.0
    %v108 = vmax.f32 %v92, 0.0
    %v109 = vmax.f32 %v93, 0.0
    %v110 = vmax.f32 %v94, 0.0
    %v111 = vmax.f32 %v95, 0.0
    %v112 = vmax.f32 %v96, 0.0
    %v113 = vmax.f32 %v97, 0.0
    %v114 = vmax.f32 %v98, 0.0
    %v115 = vmax.f32 %v99, 0.0
    %v116 = vmax.f32 %v100, 0.0
    %v117 = vmax.f32 %v101, 0.0
    %v118 = vmax.f32 %v102, 0.0
    %v119 = vmax.f32 %v103, 0.0
    %v120 = vmax.f32 %v104, 0.0
    %v121 = vmax.f32 %v105, 0.0
    %v122 = vmax.f32 %v106, 0.0
    %123 = vrot.lane.b32.xlu0 %v53, 64
    %v124 = vpop.permute.xlu0 %123
    %v126 = vmul.f32 %v59, %v124
    %v127 = vmul.f32 %v60, %v124
    %v128 = vmul.f32 %v61, %v124
    %v129 = vmul.f32 %v62, %v124
    %v130 = vmul.f32 %v63, %v124
    %v131 = vmul.f32 %v64, %v124
    %v132 = vmul.f32 %v65, %v124
    %v133 = vmul.f32 %v66, %v124
    %v134 = vmul.f32 %v67, %v124
    %v135 = vmul.f32 %v68, %v124
    %v136 = vmul.f32 %v69, %v124
    %v137 = vmul.f32 %v70, %v124
    %v138 = vmul.f32 %v71, %v124
    %v139 = vmul.f32 %v72, %v124
    %v140 = vmul.f32 %v73, %v124
    %v141 = vmul.f32 %v74, %v124
    %142 = vrot.lane.b32.xlu0 %v57, 64
    %v143 = vpop.permute.xlu0 %142
    %v145 = vadd.f32 %v126, %v143
    %v146 = vadd.f32 %v127, %v143
    %v147 = vadd.f32 %v128, %v143
    %v148 = vadd.f32 %v129, %v143
    %v149 = vadd.f32 %v130, %v143
    %v150 = vadd.f32 %v131, %v143
    %v151 = vadd.f32 %v132, %v143
    %v152 = vadd.f32 %v133, %v143
    %v153 = vadd.f32 %v134, %v143
    %v154 = vadd.f32 %v135, %v143
    %v155 = vadd.f32 %v136, %v143
    %v156 = vadd.f32 %v137, %v143
    %v157 = vadd.f32 %v138, %v143
    %v158 = vadd.f32 %v139, %v143
    %v159 = vadd.f32 %v140, %v143
    %v160 = vadd.f32 %v141, %v143
    %v161 = vmax.f32 %v145, 0.0
    %v162 = vmax.f32 %v146, 0.0
    %v163 = vmax.f32 %v147, 0.0
    %v164 = vmax.f32 %v148, 0.0
    %v165 = vmax.f32 %v149, 0.0
    %v166 = vmax.f32 %v150, 0.0
    %v167 = vmax.f32 %v151, 0.0
    %v168 = vmax.f32 %v152, 0.0
    %v169 = vmax.f32 %v153, 0.0
    %v170 = vmax.f32 %v154, 0.0
    %v171 = vmax.f32 %v155, 0.0
    %v172 = vmax.f32 %v156, 0.0
    %v173 = vmax.f32 %v157, 0.0
    %v174 = vmax.f32 %v158, 0.0
    %v175 = vmax.f32 %v159, 0.0
    %v176 = vmax.f32 %v160, 0.0
    %193 = vrot.lane.b32.xlu0 %v161, 64
    %v194 = vpop.permute.xlu0 %193
    %195 = vrot.lane.b32.xlu0 %v162, 64
    %v196 = vpop.permute.xlu0 %195
    %197 = vrot.lane.b32.xlu0 %v163, 64
    %v198 = vpop.permute.xlu0 %197
    %199 = vrot.lane.b32.xlu0 %v164, 64
    %v200 = vpop.permute.xlu0 %199
    %201 = vrot.lane.b32.xlu0 %v165, 64
    %v202 = vpop.permute.xlu0 %201
    %203 = vrot.lane.b32.xlu0 %v166, 64
    %v204 = vpop.permute.xlu0 %203
    %205 = vrot.lane.b32.xlu0 %v167, 64
    %v206 = vpop.permute.xlu0 %205
    %207 = vrot.lane.b32.xlu0 %v168, 64
    %v208 = vpop.permute.xlu0 %207
    %209 = vrot.lane.b32.xlu0 %v169, 64
    %v210 = vpop.permute.xlu0 %209
    %211 = vrot.lane.b32.xlu0 %v170, 64
    %v212 = vpop.permute.xlu0 %211
    %213 = vrot.lane.b32.xlu0 %v171, 64
    %v214 = vpop.permute.xlu0 %213
    %215 = vrot.lane.b32.xlu0 %v172, 64
    %v216 = vpop.permute.xlu0 %215
    %217 = vrot.lane.b32.xlu0 %v173, 64
    %v218 = vpop.permute.xlu0 %217
    %219 = vrot.lane.b32.xlu0 %v174, 64
    %v220 = vpop.permute.xlu0 %219
    %221 = vrot.lane.b32.xlu0 %v175, 64
    %v222 = vpop.permute.xlu0 %221
    %223 = vrot.lane.b32.xlu0 %v176, 64
    %v224 = vpop.permute.xlu0 %223
    %v241 = vadd.f32 %v107, %v194
    %v242 = vadd.f32 %v108, %v196
    %v243 = vadd.f32 %v109, %v198
    %v244 = vadd.f32 %v110, %v200
    %v245 = vadd.f32 %v111, %v202
    %v246 = vadd.f32 %v112, %v204
    %v247 = vadd.f32 %v113, %v206
    %v248 = vadd.f32 %v114, %v208
    %v249 = vadd.f32 %v115, %v210
    %v250 = vadd.f32 %v116, %v212
    %v251 = vadd.f32 %v117, %v214
    %v252 = vadd.f32 %v118, %v216
    %v253 = vadd.f32 %v119, %v218
    %v254 = vadd.f32 %v120, %v220
    %v255 = vadd.f32 %v121, %v222
    %v256 = vadd.f32 %v122, %v224
    %v257 = vunpack.c.l.bf16 %v20
    %v258 = vunpack.c.l.bf16 %v22
    %v259 = vunpack.c.l.bf16 %v24
    %v260 = vunpack.c.l.bf16 %v26
    %v261 = vunpack.c.l.bf16 %v28
    %v262 = vunpack.c.l.bf16 %v30
    %v263 = vunpack.c.l.bf16 %v32
    %v264 = vunpack.c.l.bf16 %v34
    %v265 = vunpack.c.l.bf16 %v36
    %v266 = vunpack.c.l.bf16 %v38
    %v267 = vunpack.c.l.bf16 %v40
    %v268 = vunpack.c.l.bf16 %v42
    %v269 = vunpack.c.l.bf16 %v44
    %v270 = vunpack.c.l.bf16 %v46
    %v271 = vunpack.c.l.bf16 %v48
    %v272 = vunpack.c.l.bf16 %v50
    %v273 = vmul.f32 %v257, %v53
    %v274 = vmul.f32 %v258, %v53
    %v275 = vmul.f32 %v259, %v53
    %v276 = vmul.f32 %v260, %v53
    %v277 = vmul.f32 %v261, %v53
    %v278 = vmul.f32 %v262, %v53
    %v279 = vmul.f32 %v263, %v53
    %v280 = vmul.f32 %v264, %v53
    %v281 = vmul.f32 %v265, %v53
    %v282 = vmul.f32 %v266, %v53
    %v283 = vmul.f32 %v267, %v53
    %v284 = vmul.f32 %v268, %v53
    %v285 = vmul.f32 %v269, %v53
    %v286 = vmul.f32 %v270, %v53
    %v287 = vmul.f32 %v271, %v53
    %v288 = vmul.f32 %v272, %v53
    %v289 = vadd.f32 %v273, %v57
    %v290 = vadd.f32 %v274, %v57
    %v291 = vadd.f32 %v275, %v57
    %v292 = vadd.f32 %v276, %v57
    %v293 = vadd.f32 %v277, %v57
    %v294 = vadd.f32 %v278, %v57
    %v295 = vadd.f32 %v279, %v57
    %v296 = vadd.f32 %v280, %v57
    %v297 = vadd.f32 %v281, %v57
    %v298 = vadd.f32 %v282, %v57
    %v299 = vadd.f32 %v283, %v57
    %v300 = vadd.f32 %v284, %v57
    %v301 = vadd.f32 %v285, %v57
    %v302 = vadd.f32 %v286, %v57
    %v303 = vadd.f32 %v287, %v57
    %v304 = vadd.f32 %v288, %v57
    %v305 = vmax.f32 %v289, 0.0
    %v306 = vmax.f32 %v290, 0.0
    %v307 = vmax.f32 %v291, 0.0
    %v308 = vmax.f32 %v292, 0.0
    %v309 = vmax.f32 %v293, 0.0
    %v310 = vmax.f32 %v294, 0.0
    %v311 = vmax.f32 %v295, 0.0
    %v312 = vmax.f32 %v296, 0.0
    %v313 = vmax.f32 %v297, 0.0
    %v314 = vmax.f32 %v298, 0.0
    %v315 = vmax.f32 %v299, 0.0
    %v316 = vmax.f32 %v300, 0.0
    %v317 = vmax.f32 %v301, 0.0
    %v318 = vmax.f32 %v302, 0.0
    %v319 = vmax.f32 %v303, 0.0
    %v320 = vmax.f32 %v304, 0.0
    %v321 = vadd.f32 %v241, %v305
    %v322 = vadd.f32 %v242, %v306
    %v323 = vadd.f32 %v243, %v307
    %v324 = vadd.f32 %v244, %v308
    %v325 = vadd.f32 %v245, %v309
    %v326 = vadd.f32 %v246, %v310
    %v327 = vadd.f32 %v247, %v311
    %v328 = vadd.f32 %v248, %v312
    %v329 = vadd.f32 %v249, %v313
    %v330 = vadd.f32 %v250, %v314
    %v331 = vadd.f32 %v251, %v315
    %v332 = vadd.f32 %v252, %v316
    %v333 = vadd.f32 %v253, %v317
    %v334 = vadd.f32 %v254, %v318
    %v335 = vadd.f32 %v255, %v319
    %v336 = vadd.f32 %v256, %v320
    %v337 = vmul.f32 %v257, %v124
    %v338 = vmul.f32 %v258, %v124
    %v339 = vmul.f32 %v259, %v124
    %v340 = vmul.f32 %v260, %v124
    %v341 = vmul.f32 %v261, %v124
    %v342 = vmul.f32 %v262, %v124
    %v343 = vmul.f32 %v263, %v124
    %v344 = vmul.f32 %v264, %v124
    %v345 = vmul.f32 %v265, %v124
    %v346 = vmul.f32 %v266, %v124
    %v347 = vmul.f32 %v267, %v124
    %v348 = vmul.f32 %v268, %v124
    %v349 = vmul.f32 %v269, %v124
    %v350 = vmul.f32 %v270, %v124
    %v351 = vmul.f32 %v271, %v124
    %v352 = vmul.f32 %v272, %v124
    %v353 = vadd.f32 %v337, %v143
    %v354 = vadd.f32 %v338, %v143
    %v355 = vadd.f32 %v339, %v143
    %v356 = vadd.f32 %v340, %v143
    %v357 = vadd.f32 %v341, %v143
    %v358 = vadd.f32 %v342, %v143
    %v359 = vadd.f32 %v343, %v143
    %v360 = vadd.f32 %v344, %v143
    %v361 = vadd.f32 %v345, %v143
    %v362 = vadd.f32 %v346, %v143
    %v363 = vadd.f32 %v347, %v143
    %v364 = vadd.f32 %v348, %v143
    %v365 = vadd.f32 %v349, %v143
    %v366 = vadd.f32 %v350, %v143
    %v367 = vadd.f32 %v351, %v143
    %v368 = vadd.f32 %v352, %v143
    %v369 = vmax.f32 %v353, 0.0
    %v370 = vmax.f32 %v354, 0.0
    %v371 = vmax.f32 %v355, 0.0
    %v372 = vmax.f32 %v356, 0.0
    %v373 = vmax.f32 %v357, 0.0
    %v374 = vmax.f32 %v358, 0.0
    %v375 = vmax.f32 %v359, 0.0
    %v376 = vmax.f32 %v360, 0.0
    %v377 = vmax.f32 %v361, 0.0
    %v378 = vmax.f32 %v362, 0.0
    %v379 = vmax.f32 %v363, 0.0
    %v380 = vmax.f32 %v364, 0.0
    %v381 = vmax.f32 %v365, 0.0
    %v382 = vmax.f32 %v366, 0.0
    %v383 = vmax.f32 %v367, 0.0
    %v384 = vmax.f32 %v368, 0.0
    %401 = vrot.lane.b32.xlu0 %v369, 64
    %v402 = vpop.permute.xlu0 %401
    %403 = vrot.lane.b32.xlu0 %v370, 64
    %v404 = vpop.permute.xlu0 %403
    %405 = vrot.lane.b32.xlu0 %v371, 64
    %v406 = vpop.permute.xlu0 %405
    %407 = vrot.lane.b32.xlu0 %v372, 64
    %v408 = vpop.permute.xlu0 %407
    %409 = vrot.lane.b32.xlu0 %v373, 64
    %v410 = vpop.permute.xlu0 %409
    %411 = vrot.lane.b32.xlu0 %v374, 64
    %v412 = vpop.permute.xlu0 %411
    %413 = vrot.lane.b32.xlu0 %v375, 64
    %v414 = vpop.permute.xlu0 %413
    %415 = vrot.lane.b32.xlu0 %v376, 64
    %v416 = vpop.permute.xlu0 %415
    %417 = vrot.lane.b32.xlu0 %v377, 64
    %v418 = vpop.permute.xlu0 %417
    %419 = vrot.lane.b32.xlu0 %v378, 64
    %v420 = vpop.permute.xlu0 %419
    %421 = vrot.lane.b32.xlu0 %v379, 64
    %v422 = vpop.permute.xlu0 %421
    %423 = vrot.lane.b32.xlu0 %v380, 64
    %v424 = vpop.permute.xlu0 %423
    %425 = vrot.lane.b32.xlu0 %v381, 64
    %v426 = vpop.permute.xlu0 %425
    %427 = vrot.lane.b32.xlu0 %v382, 64
    %v428 = vpop.permute.xlu0 %427
    %429 = vrot.lane.b32.xlu0 %v383, 64
    %v430 = vpop.permute.xlu0 %429
    %431 = vrot.lane.b32.xlu0 %v384, 64
    %v432 = vpop.permute.xlu0 %431
    %v449 = vadd.f32 %v321, %v402
    %v450 = vadd.f32 %v322, %v404
    %v451 = vadd.f32 %v323, %v406
    %v452 = vadd.f32 %v324, %v408
    %v453 = vadd.f32 %v325, %v410
    %v454 = vadd.f32 %v326, %v412
    %v455 = vadd.f32 %v327, %v414
    %v456 = vadd.f32 %v328, %v416
    %v457 = vadd.f32 %v329, %v418
    %v458 = vadd.f32 %v330, %v420
    %v459 = vadd.f32 %v331, %v422
    %v460 = vadd.f32 %v332, %v424
    %v461 = vadd.f32 %v333, %v426
    %v462 = vadd.f32 %v334, %v428
    %v463 = vadd.f32 %v335, %v430
    %v464 = vadd.f32 %v336, %v432
    %v465 = vpack.c.bf16 %v450, %v449
    %v466 = vpack.c.bf16 %v452, %v451
    %v467 = vpack.c.bf16 %v454, %v453
    %v468 = vpack.c.bf16 %v456, %v455
    %v469 = vpack.c.bf16 %v458, %v457
    %v470 = vpack.c.bf16 %v460, %v459
    %v471 = vpack.c.bf16 %v462, %v461
    %v472 = vpack.c.bf16 %v464, %v463
    %v473 = vld [vmem:[%s3] sm:$0xf]
    %v474 = vld [vmem:[%s3 + $0x4] sm:$0xf]
    %v475 = vld [vmem:[%s3 + $0x8] sm:$0xf]
    %v476 = vld [vmem:[%s3 + $0xc] sm:$0xf]
    %v477 = vld [vmem:[%s3 + $0x10] sm:$0xf]
    %v478 = vld [vmem:[%s3 + $0x14] sm:$0xf]
    %v479 = vld [vmem:[%s3 + $0x18] sm:$0xf]
    %v480 = vld [vmem:[%s3 + $0x1c] sm:$0xf]
    %v489 = vunpack.c.l.b16 %v473
    %v490 = vunpack.c.l.b16 %v474
    %v491 = vunpack.c.l.b16 %v475
    %v492 = vunpack.c.l.b16 %v476
    %v493 = vunpack.c.l.b16 %v477
    %v494 = vunpack.c.l.b16 %v478
    %v495 = vunpack.c.l.b16 %v479
    %v496 = vunpack.c.l.b16 %v480
    %v497 = vpack.c.b16 %v490, %v489
    %v498 = vpack.c.b16 %v492, %v491
    %v499 = vpack.c.b16 %v494, %v493
    %v500 = vpack.c.b16 %v496, %v495
    %vm505 = vcmask 523264
    %v507 = vsel %vm505, %v465, 0
    %v510 = vsel %vm505, %v466, 0
    %v513 = vsel %vm505, %v467, 0
    %v516 = vsel %vm505, %v468, 0
    %v519 = vsel %vm505, %v469, 0
    %v522 = vsel %vm505, %v470, 0
    %v525 = vsel %vm505, %v471, 0
    %v528 = vsel %vm505, %v472, 0
    %530 = vmatpush.bf16.msra.mxu0 0
    %531 = vmatpush.bf16.msra.mxu0 0
    %532 = vmatpush.bf16.msra.mxu0 0
    %533 = vmatpush.bf16.msra.mxu0 0
    %534 = vmatpush.bf16.msra.mxu0 %v500
    %535 = vmatpush.bf16.msra.mxu0 %v499
    %536 = vmatpush.bf16.msra.mxu0 %v498
    %537 = vmatpush.bf16.msra.mxu0 %v497
    %538 = vmatmul.bf16.gmra.mxu0 %v507
    %v539 = vpop.f32.mrf.mxu0
    %v540 = vadd.f32 0.0, %v539
    %v541 = vpop.f32.mrf.mxu0
    %v542 = vadd.f32 0.0, %v541
    %543 = vmatmul.bf16.gmra.mxu0 %v510
    %v544 = vpop.f32.mrf.mxu0
    %v545 = vadd.f32 0.0, %v544
    %v546 = vpop.f32.mrf.mxu0
    %v547 = vadd.f32 0.0, %v546
    %548 = vmatmul.bf16.gmra.mxu0 %v513
    %v549 = vpop.f32.mrf.mxu0
    %v550 = vadd.f32 0.0, %v549
    %v551 = vpop.f32.mrf.mxu0
    %v552 = vadd.f32 0.0, %v551
    %553 = vmatmul.bf16.gmra.mxu0 %v516
    %v554 = vpop.f32.mrf.mxu0
    %v555 = vadd.f32 0.0, %v554
    %v556 = vpop.f32.mrf.mxu0
    %v557 = vadd.f32 0.0, %v556
    %558 = vmatmul.bf16.gmra.mxu0 %v519
    %v559 = vpop.f32.mrf.mxu0
    %v560 = vadd.f32 0.0, %v559
    %v561 = vpop.f32.mrf.mxu0
    %v562 = vadd.f32 0.0, %v561
    %563 = vmatmul.bf16.gmra.mxu0 %v522
    %v564 = vpop.f32.mrf.mxu0
    %v565 = vadd.f32 0.0, %v564
    %v566 = vpop.f32.mrf.mxu0
    %v567 = vadd.f32 0.0, %v566
    %568 = vmatmul.bf16.gmra.mxu0 %v525
    %v569 = vpop.f32.mrf.mxu0
    %v570 = vadd.f32 0.0, %v569
    %v571 = vpop.f32.mrf.mxu0
    %v572 = vadd.f32 0.0, %v571
    %573 = vmatmul.bf16.gmra.mxu0 %v528
    %v574 = vpop.f32.mrf.mxu0
    %v575 = vadd.f32 0.0, %v574
    %v576 = vpop.f32.mrf.mxu0
    %v577 = vadd.f32 0.0, %v576
    %578 = vdwg.mxu0
    %579 = vst [vmem:[#allocation2] sm:$0xff] %v540
    %580 = vst [vmem:[#allocation2 + $0x8] sm:$0xff] %v542
    %581 = vst [vmem:[#allocation2 + $0x10] sm:$0xff] %v545
    %582 = vst [vmem:[#allocation2 + $0x18] sm:$0xff] %v547
    %583 = vst [vmem:[#allocation2 + $0x20] sm:$0xff] %v550
    %584 = vst [vmem:[#allocation2 + $0x28] sm:$0xff] %v552
    %585 = vst [vmem:[#allocation2 + $0x30] sm:$0xff] %v555
    %586 = vst [vmem:[#allocation2 + $0x38] sm:$0xff] %v557
    %587 = vst [vmem:[#allocation2 + $0x40] sm:$0xff] %v560
    %588 = vst [vmem:[#allocation2 + $0x48] sm:$0xff] %v562
    %589 = vst [vmem:[#allocation2 + $0x50] sm:$0xff] %v565
    %590 = vst [vmem:[#allocation2 + $0x58] sm:$0xff] %v567
    %591 = vst [vmem:[#allocation2 + $0x60] sm:$0xff] %v570
    %592 = vst [vmem:[#allocation2 + $0x68] sm:$0xff] %v572
    %593 = vst [vmem:[#allocation2 + $0x70] sm:$0xff] %v575
    %594 = vst [vmem:[#allocation2 + $0x78] sm:$0xff] %v577
    // Predicated region
    $region18: #{transition_layer_forward.3} parent=1 // pred_check
      _
    $region19: #{transition_layer_forward.3} parent=1 // pred_check_branch
      %596 = sbr.rel (0) target = $region21
    $region20: #{transition_layer_forward.3} parent=1 // pred_region
      %598 = vsyncadd [#allocation3], 0
      %s599 = sshll.u32 [#allocation2], 4
      %s600 = int_to_ptr.vmem [resolvable:$true] %s599
      %s601 = sshll.u32 %s4, 4
      %s602 = int_to_ptr.hbm [resolvable:$true] %s601
      %607 = dma.vmem_to_hbm [thread:$0]  %s600, 2048, %s602, [#allocation3], 128, 128, 8
    $region21: #{transition_layer_forward.3} parent=1 // pred_fallthru
      _
    // Predicated region
    $region22: #{transition_layer_forward.3} parent=1 // pred_check
      _
    $region23: #{transition_layer_forward.3} parent=1 // pred_check_branch
      %609 = sbr.rel (0) target = $region25
    $region24: #{transition_layer_forward.3} parent=1 // pred_region
      %611 = dma.done [#allocation3], 2048
    $region25: #{transition_layer_forward.3} parent=1 // pred_fallthru
      _
    %612 = vsyncpa [#allocation3], 1

// kernel: transition_layer_forward.2
$region0: #{transition_layer_forward.2}
  #allocation0 [shape = 'u32[]', space=smem, size = 0x4, offset = 0x4, fixed_abs, tag = 'smem constant byte address 0x4 - core index']
  #allocation1 [shape = 'u32[72,128]{1,0:T(1,128)}', space=vmem, size = 0x9000, scoped, tag = 'internal scratch']
  #allocation2 [shape = 'f32[8,64]{1,0:T(8,128)}', space=vmem, size = 0x1000, scoped, tag = 'scratch operand']
  #allocation3 [shape = 'f32[8,64]{1,0:T(8,128)}', space=vmem, size = 0x1000, scoped, tag = 'scratch operand']
  %s0 = inlined_call_operand.vmem [shape: bf16[512,64], index: 0, kind: input, shape index: {}]
  %s1 = inlined_call_operand.vmem [shape: f32[1,64], index: 1, kind: output, shape index: {0}]
  %s2 = inlined_call_operand.vmem [shape: f32[1,64], index: 2, kind: output, shape index: {1}]
  %3 = xla_tuple %s1, %s2
  %s4 = sld [smem:[#allocation0]]
  $region30: #{transition_layer_forward.2} parent=0
    _
  %s6 = ssub.s32 1, %s4
  %s7 = scalar_select 0, %s6, %s4
  // Predicated region
  $region2: #{transition_layer_forward.2} parent=0 // pred_check
    _
  $region3: #{transition_layer_forward.2} parent=0 // pred_check_branch
    %9 = sbr.rel (0) target = $region5
  $region4: #{transition_layer_forward.2} parent=0 // pred_region
    %s10 = sadd.s32 0, 0
    %s11 = smul.u32 64, %s10
    %p12 = scmp.lt.s32.totalorder %s11, 63
    %s13 = scalar_select %p12, %s11, 63
    %s14 = smul.addr %s13, 4
    %s15 = scalar_lea.vmem %s0, %s14
    %s16 = sadd.s32 0, 0
    %s17 = smul.u32 64, %s16
  $region5: #{transition_layer_forward.2} parent=0 // pred_fallthru
    _
  %s18 = sadd.s32 0, 0
  %s19 = smul.u32 64, %s18
  %p20 = scmp.lt.s32.totalorder %s19, 63
  %s21 = scalar_select %p20, %s19, 63
  %s22 = smul.addr %s21, 4
  %s23 = scalar_lea.vmem %s0, %s22
  %s24 = sadd.s32 0, 0
  %s25 = smul.u32 64, %s24
  %p26 = scmp.lt.s32.totalorder %s25, 63
  %s27 = scalar_select %p26, %s25, 63
  %s28 = smul.addr %s27, 4
  %s29 = scalar_lea.vmem %s0, %s28
  %s30 = sadd.s32 0, 0
  %s31 = smul.u32 64, %s30
  %p32 = scmp.eq.s32.totalorder 0, 0
  // Predicated region
  $region6: #{transition_layer_forward.2} parent=0 // pred_check
    %p33 = pneg %p32
  $region7: #{transition_layer_forward.2} parent=0 // pred_check_branch
    %35 = sbr.rel (%p33) target = $region9
  $region8: #{transition_layer_forward.2} parent=0 // pred_region
    %vm36 = vcmask 523264
    %37 = vst.msk [vmem:[#allocation2] sm:$0xff] %vm36, 0.0
    %38 = vst.msk [vmem:[#allocation3] sm:$0xff] %vm36, 0.0
  $region9: #{transition_layer_forward.2} parent=0 // pred_fallthru
    _
  %v39 = vld [vmem:[%s29] sm:$0xf]
  %v40 = vld [vmem:[%s29 + $0x4] sm:$0xf]
  %v41 = vld [vmem:[%s29 + $0x8] sm:$0xf]
  %v42 = vld [vmem:[%s29 + $0xc] sm:$0xf]
  %v43 = vld [vmem:[%s29 + $0x10] sm:$0xf]
  %v44 = vld [vmem:[%s29 + $0x14] sm:$0xf]
  %v45 = vld [vmem:[%s29 + $0x18] sm:$0xf]
  %v46 = vld [vmem:[%s29 + $0x1c] sm:$0xf]
  %v47 = vld [vmem:[%s29 + $0x20] sm:$0xf]
  %v48 = vld [vmem:[%s29 + $0x24] sm:$0xf]
  %v49 = vld [vmem:[%s29 + $0x28] sm:$0xf]
  %v50 = vld [vmem:[%s29 + $0x2c] sm:$0xf]
  %v51 = vld [vmem:[%s29 + $0x30] sm:$0xf]
  %v52 = vld [vmem:[%s29 + $0x34] sm:$0xf]
  %v53 = vld [vmem:[%s29 + $0x38] sm:$0xf]
  %v54 = vld [vmem:[%s29 + $0x3c] sm:$0xf]
  %v55 = vld [vmem:[%s29 + $0x40] sm:$0xf]
  %v56 = vld [vmem:[%s29 + $0x44] sm:$0xf]
  %v57 = vld [vmem:[%s29 + $0x48] sm:$0xf]
  %v58 = vld [vmem:[%s29 + $0x4c] sm:$0xf]
  %v59 = vld [vmem:[%s29 + $0x50] sm:$0xf]
  %v60 = vld [vmem:[%s29 + $0x54] sm:$0xf]
  %v61 = vld [vmem:[%s29 + $0x58] sm:$0xf]
  %v62 = vld [vmem:[%s29 + $0x5c] sm:$0xf]
  %v63 = vld [vmem:[%s29 + $0x60] sm:$0xf]
  %v64 = vld [vmem:[%s29 + $0x64] sm:$0xf]
  %v65 = vld [vmem:[%s29 + $0x68] sm:$0xf]
  %v66 = vld [vmem:[%s29 + $0x6c] sm:$0xf]
  %v67 = vld [vmem:[%s29 + $0x70] sm:$0xf]
  %v68 = vld [vmem:[%s29 + $0x74] sm:$0xf]
  %v69 = vld [vmem:[%s29 + $0x78] sm:$0xf]
  %v70 = vld [vmem:[%s29 + $0x7c] sm:$0xf]
  %v71 = vld [vmem:[%s29 + $0x80] sm:$0xf]
  %v72 = vld [vmem:[%s29 + $0x84] sm:$0xf]
  %v73 = vld [vmem:[%s29 + $0x88] sm:$0xf]
  %v74 = vld [vmem:[%s29 + $0x8c] sm:$0xf]
  %v75 = vld [vmem:[%s29 + $0x90] sm:$0xf]
  %v76 = vld [vmem:[%s29 + $0x94] sm:$0xf]
  %v77 = vld [vmem:[%s29 + $0x98] sm:$0xf]
  %v78 = vld [vmem:[%s29 + $0x9c] sm:$0xf]
  %v79 = vld [vmem:[%s29 + $0xa0] sm:$0xf]
  %v80 = vld [vmem:[%s29 + $0xa4] sm:$0xf]
  %v81 = vld [vmem:[%s29 + $0xa8] sm:$0xf]
  %v82 = vld [vmem:[%s29 + $0xac] sm:$0xf]
  %v83 = vld [vmem:[%s29 + $0xb0] sm:$0xf]
  %v84 = vld [vmem:[%s29 + $0xb4] sm:$0xf]
  %v85 = vld [vmem:[%s29 + $0xb8] sm:$0xf]
  %v86 = vld [vmem:[%s29 + $0xbc] sm:$0xf]
  %v87 = vld [vmem:[%s29 + $0xc0] sm:$0xf]
  %v88 = vld [vmem:[%s29 + $0xc4] sm:$0xf]
  %v89 = vld [vmem:[%s29 + $0xc8] sm:$0xf]
  %v90 = vld [vmem:[%s29 + $0xcc] sm:$0xf]
  %v91 = vld [vmem:[%s29 + $0xd0] sm:$0xf]
  %v92 = vld [vmem:[%s29 + $0xd4] sm:$0xf]
  %v93 = vld [vmem:[%s29 + $0xd8] sm:$0xf]
  %v94 = vld [vmem:[%s29 + $0xdc] sm:$0xf]
  %v95 = vld [vmem:[%s29 + $0xe0] sm:$0xf]
  %v96 = vld [vmem:[%s29 + $0xe4] sm:$0xf]
  %v97 = vld [vmem:[%s29 + $0xe8] sm:$0xf]
  %v98 = vld [vmem:[%s29 + $0xec] sm:$0xf]
  %v99 = vld [vmem:[%s29 + $0xf0] sm:$0xf]
  %v100 = vld [vmem:[%s29 + $0xf4] sm:$0xf]
  %v101 = vld [vmem:[%s29 + $0xf8] sm:$0xf]
  %v102 = vld [vmem:[%s29 + $0xfc] sm:$0xf]
  %v103 = vunpack.c.l.bf16 %v39
  %v104 = vunpack.c.l.bf16 %v40
  %v105 = vunpack.c.l.bf16 %v41
  %v106 = vunpack.c.l.bf16 %v42
  %v107 = vunpack.c.l.bf16 %v43
  %v108 = vunpack.c.l.bf16 %v44
  %v109 = vunpack.c.l.bf16 %v45
  %v110 = vunpack.c.l.bf16 %v46
  %v111 = vunpack.c.l.bf16 %v47
  %v112 = vunpack.c.l.bf16 %v48
  %v113 = vunpack.c.l.bf16 %v49
  %v114 = vunpack.c.l.bf16 %v50
  %v115 = vunpack.c.l.bf16 %v51
  %v116 = vunpack.c.l.bf16 %v52
  %v117 = vunpack.c.l.bf16 %v53
  %v118 = vunpack.c.l.bf16 %v54
  %v119 = vunpack.c.l.bf16 %v55
  %v120 = vunpack.c.l.bf16 %v56
  %v121 = vunpack.c.l.bf16 %v57
  %v122 = vunpack.c.l.bf16 %v58
  %v123 = vunpack.c.l.bf16 %v59
  %v124 = vunpack.c.l.bf16 %v60
  %v125 = vunpack.c.l.bf16 %v61
  %v126 = vunpack.c.l.bf16 %v62
  %v127 = vunpack.c.l.bf16 %v63
  %v128 = vunpack.c.l.bf16 %v64
  %v129 = vunpack.c.l.bf16 %v65
  %v130 = vunpack.c.l.bf16 %v66
  %v131 = vunpack.c.l.bf16 %v67
  %v132 = vunpack.c.l.bf16 %v68
  %v133 = vunpack.c.l.bf16 %v69
  %v134 = vunpack.c.l.bf16 %v70
  %v135 = vunpack.c.l.bf16 %v71
  %v136 = vunpack.c.l.bf16 %v72
  %v137 = vunpack.c.l.bf16 %v73
  %v138 = vunpack.c.l.bf16 %v74
  %v139 = vunpack.c.l.bf16 %v75
  %v140 = vunpack.c.l.bf16 %v76
  %v141 = vunpack.c.l.bf16 %v77
  %v142 = vunpack.c.l.bf16 %v78
  %v143 = vunpack.c.l.bf16 %v79
  %v144 = vunpack.c.l.bf16 %v80
  %v145 = vunpack.c.l.bf16 %v81
  %v146 = vunpack.c.l.bf16 %v82
  %v147 = vunpack.c.l.bf16 %v83
  %v148 = vunpack.c.l.bf16 %v84
  %v149 = vunpack.c.l.bf16 %v85
  %v150 = vunpack.c.l.bf16 %v86
  %v151 = vunpack.c.l.bf16 %v87
  %v152 = vunpack.c.l.bf16 %v88
  %v153 = vunpack.c.l.bf16 %v89
  %v154 = vunpack.c.l.bf16 %v90
  %v155 = vunpack.c.l.bf16 %v91
  %v156 = vunpack.c.l.bf16 %v92
  %v157 = vunpack.c.l.bf16 %v93
  %v158 = vunpack.c.l.bf16 %v94
  %v159 = vunpack.c.l.bf16 %v95
  %v160 = vunpack.c.l.bf16 %v96
  %v161 = vunpack.c.l.bf16 %v97
  %v162 = vunpack.c.l.bf16 %v98
  %v163 = vunpack.c.l.bf16 %v99
  %v164 = vunpack.c.l.bf16 %v100
  %v165 = vunpack.c.l.bf16 %v101
  %v166 = vunpack.c.l.bf16 %v102
  %v167 = vld [vmem:[#allocation2] sm:$0xff]
  %vm168 = vcmask 523264
  %v169 = vsel %vm168, %v103, 0.0
  %v170 = vsel %vm168, %v104, 0.0
  %v171 = vadd.f32 %v169, %v170
  %v172 = vsel %vm168, %v105, 0.0
  %v173 = vadd.f32 %v171, %v172
  %v174 = vsel %vm168, %v106, 0.0
  %v175 = vadd.f32 %v173, %v174
  %v176 = vsel %vm168, %v107, 0.0
  %v177 = vadd.f32 %v175, %v176
  %v178 = vsel %vm168, %v108, 0.0
  %v179 = vadd.f32 %v177, %v178
  %v180 = vsel %vm168, %v109, 0.0
  %v181 = vadd.f32 %v179, %v180
  %v182 = vsel %vm168, %v110, 0.0
  %v183 = vadd.f32 %v181, %v182
  %v184 = vsel %vm168, %v111, 0.0
  %v185 = vadd.f32 %v183, %v184
  %v186 = vsel %vm168, %v112, 0.0
  %v187 = vadd.f32 %v185, %v186
  %v188 = vsel %vm168, %v113, 0.0
  %v189 = vadd.f32 %v187, %v188
  %v190 = vsel %vm168, %v114, 0.0
  %v191 = vadd.f32 %v189, %v190
  %v192 = vsel %vm168, %v115, 0.0
  %v193 = vadd.f32 %v191, %v192
  %v194 = vsel %vm168, %v116, 0.0
  %v195 = vadd.f32 %v193, %v194
  %v196 = vsel %vm168, %v117, 0.0
  %v197 = vadd.f32 %v195, %v196
  %v198 = vsel %vm168, %v118, 0.0
  %v199 = vadd.f32 %v197, %v198
  %v200 = vsel %vm168, %v119, 0.0
  %v201 = vadd.f32 %v199, %v200
  %v202 = vsel %vm168, %v120, 0.0
  %v203 = vadd.f32 %v201, %v202
  %v204 = vsel %vm168, %v121, 0.0
  %v205 = vadd.f32 %v203, %v204
  %v206 = vsel %vm168, %v122, 0.0
  %v207 = vadd.f32 %v205, %v206
  %v208 = vsel %vm168, %v123, 0.0
  %v209 = vadd.f32 %v207, %v208
  %v210 = vsel %vm168, %v124, 0.0
  %v211 = vadd.f32 %v209, %v210
  %v212 = vsel %vm168, %v125, 0.0
  %v213 = vadd.f32 %v211, %v212
  %v214 = vsel %vm168, %v126, 0.0
  %v215 = vadd.f32 %v213, %v214
  %v216 = vsel %vm168, %v127, 0.0
  %v217 = vadd.f32 %v215, %v216
  %v218 = vsel %vm168, %v128, 0.0
  %v219 = vadd.f32 %v217, %v218
  %v220 = vsel %vm168, %v129, 0.0
  %v221 = vadd.f32 %v219, %v220
  %v222 = vsel %vm168, %v130, 0.0
  %v223 = vadd.f32 %v221, %v222
  %v224 = vsel %vm168, %v131, 0.0
  %v225 = vadd.f32 %v223, %v224
  %v226 = vsel %vm168, %v132, 0.0
  %v227 = vadd.f32 %v225, %v226
  %v228 = vsel %vm168, %v133, 0.0
  %v229 = vadd.f32 %v227, %v228
  %v230 = vsel %vm168, %v134, 0.0
  %v231 = vadd.f32 %v229, %v230
  %v232 = vsel %vm168, %v135, 0.0
  %v233 = vadd.f32 %v231, %v232
  %v234 = vsel %vm168, %v136, 0.0
  %v235 = vadd.f32 %v233, %v234
  %v236 = vsel %vm168, %v137, 0.0
  %v237 = vadd.f32 %v235, %v236
  %v238 = vsel %vm168, %v138, 0.0
  %v239 = vadd.f32 %v237, %v238
  %v240 = vsel %vm168, %v139, 0.0
  %v241 = vadd.f32 %v239, %v240
  %v242 = vsel %vm168, %v140, 0.0
  %v243 = vadd.f32 %v241, %v242
  %v244 = vsel %vm168, %v141, 0.0
  %v245 = vadd.f32 %v243, %v244
  %v246 = vsel %vm168, %v142, 0.0
  %v247 = vadd.f32 %v245, %v246
  %v248 = vsel %vm168, %v143, 0.0
  %v249 = vadd.f32 %v247, %v248
  %v250 = vsel %vm168, %v144, 0.0
  %v251 = vadd.f32 %v249, %v250
  %v252 = vsel %vm168, %v145, 0.0
  %v253 = vadd.f32 %v251, %v252
  %v254 = vsel %vm168, %v146, 0.0
  %v255 = vadd.f32 %v253, %v254
  %v256 = vsel %vm168, %v147, 0.0
  %v257 = vadd.f32 %v255, %v256
  %v258 = vsel %vm168, %v148, 0.0
  %v259 = vadd.f32 %v257, %v258
  %v260 = vsel %vm168, %v149, 0.0
  %v261 = vadd.f32 %v259, %v260
  %v262 = vsel %vm168, %v150, 0.0
  %v263 = vadd.f32 %v261, %v262
  %v264 = vsel %vm168, %v151, 0.0
  %v265 = vadd.f32 %v263, %v264
  %v266 = vsel %vm168, %v152, 0.0
  %v267 = vadd.f32 %v265, %v266
  %v268 = vsel %vm168, %v153, 0.0
  %v269 = vadd.f32 %v267, %v268
  %v270 = vsel %vm168, %v154, 0.0
  %v271 = vadd.f32 %v269, %v270
  %v272 = vsel %vm168, %v155, 0.0
  %v273 = vadd.f32 %v271, %v272
  %v274 = vsel %vm168, %v156, 0.0
  %v275 = vadd.f32 %v273, %v274
  %v276 = vsel %vm168, %v157, 0.0
  %v277 = vadd.f32 %v275, %v276
  %v278 = vsel %vm168, %v158, 0.0
  %v279 = vadd.f32 %v277, %v278
  %v280 = vsel %vm168, %v159, 0.0
  %v281 = vadd.f32 %v279, %v280
  %v282 = vsel %vm168, %v160, 0.0
  %v283 = vadd.f32 %v281, %v282
  %v284 = vsel %vm168, %v161, 0.0
  %v285 = vadd.f32 %v283, %v284
  %v286 = vsel %vm168, %v162, 0.0
  %v287 = vadd.f32 %v285, %v286
  %v288 = vsel %vm168, %v163, 0.0
  %v289 = vadd.f32 %v287, %v288
  %v290 = vsel %vm168, %v164, 0.0
  %v291 = vadd.f32 %v289, %v290
  %v292 = vsel %vm168, %v165, 0.0
  %v293 = vadd.f32 %v291, %v292
  %v294 = vsel %vm168, %v166, 0.0
  %v295 = vadd.f32 %v293, %v294
  %v296 = vadd.f32 %v167, %v295
  %297 = vst.msk [vmem:[#allocation2] sm:$0xff] %vm168, %v296
  %v298 = vld [vmem:[#allocation3] sm:$0xff]
  %v299 = vmul.f32 %v103, %v103
  %v300 = vmul.f32 %v104, %v104
  %v301 = vmul.f32 %v105, %v105
  %v302 = vmul.f32 %v106, %v106
  %v303 = vmul.f32 %v107, %v107
  %v304 = vmul.f32 %v108, %v108
  %v305 = vmul.f32 %v109, %v109
  %v306 = vmul.f32 %v110, %v110
  %v307 = vmul.f32 %v111, %v111
  %v308 = vmul.f32 %v112, %v112
  %v309 = vmul.f32 %v113, %v113
  %v310 = vmul.f32 %v114, %v114
  %v311 = vmul.f32 %v115, %v115
  %v312 = vmul.f32 %v116, %v116
  %v313 = vmul.f32 %v117, %v117
  %v314 = vmul.f32 %v118, %v118
  %v315 = vmul.f32 %v119, %v119
  %v316 = vmul.f32 %v120, %v120
  %v317 = vmul.f32 %v121, %v121
  %v318 = vmul.f32 %v122, %v122
  %v319 = vmul.f32 %v123, %v123
  %v320 = vmul.f32 %v124, %v124
  %v321 = vmul.f32 %v125, %v125
  %v322 = vmul.f32 %v126, %v126
  %v323 = vmul.f32 %v127, %v127
  %v324 = vmul.f32 %v128, %v128
  %v325 = vmul.f32 %v129, %v129
  %v326 = vmul.f32 %v130, %v130
  %v327 = vmul.f32 %v131, %v131
  %v328 = vmul.f32 %v132, %v132
  %v329 = vmul.f32 %v133, %v133
  %v330 = vmul.f32 %v134, %v134
  %v331 = vmul.f32 %v135, %v135
  %v332 = vmul.f32 %v136, %v136
  %v333 = vmul.f32 %v137, %v137
  %v334 = vmul.f32 %v138, %v138
  %v335 = vmul.f32 %v139, %v139
  %v336 = vmul.f32 %v140, %v140
  %v337 = vmul.f32 %v141, %v141
  %v338 = vmul.f32 %v142, %v142
  %v339 = vmul.f32 %v143, %v143
  %v340 = vmul.f32 %v144, %v144
  %v341 = vmul.f32 %v145, %v145
  %v342 = vmul.f32 %v146, %v146
  %v343 = vmul.f32 %v147, %v147
  %v344 = vmul.f32 %v148, %v148
  %v345 = vmul.f32 %v149, %v149
  %v346 = vmul.f32 %v150, %v150
  %v347 = vmul.f32 %v151, %v151
  %v348 = vmul.f32 %v152, %v152
  %v349 = vmul.f32 %v153, %v153
  %v350 = vmul.f32 %v154, %v154
  %v351 = vmul.f32 %v155, %v155
  %v352 = vmul.f32 %v156, %v156
  %v353 = vmul.f32 %v157, %v157
  %v354 = vmul.f32 %v158, %v158
  %v355 = vmul.f32 %v159, %v159
  %v356 = vmul.f32 %v160, %v160
  %v357 = vmul.f32 %v161, %v161
  %v358 = vmul.f32 %v162, %v162
  %v359 = vmul.f32 %v163, %v163
  %v360 = vmul.f32 %v164, %v164
  %v361 = vmul.f32 %v165, %v165
  %v362 = vmul.f32 %v166, %v166
  %v363 = vsel %vm168, %v299, 0.0
  %v364 = vsel %vm168, %v300, 0.0
  %v365 = vadd.f32 %v363, %v364
  %v366 = vsel %vm168, %v301, 0.0
  %v367 = vadd.f32 %v365, %v366
  %v368 = vsel %vm168, %v302, 0.0
  %v369 = vadd.f32 %v367, %v368
  %v370 = vsel %vm168, %v303, 0.0
  %v371 = vadd.f32 %v369, %v370
  %v372 = vsel %vm168, %v304, 0.0
  %v373 = vadd.f32 %v371, %v372
  %v374 = vsel %vm168, %v305, 0.0
  %v375 = vadd.f32 %v373, %v374
  %v376 = vsel %vm168, %v306, 0.0
  %v377 = vadd.f32 %v375, %v376
  %v378 = vsel %vm168, %v307, 0.0
  %v379 = vadd.f32 %v377, %v378
  %v380 = vsel %vm168, %v308, 0.0
  %v381 = vadd.f32 %v379, %v380
  %v382 = vsel %vm168, %v309, 0.0
  %v383 = vadd.f32 %v381, %v382
  %v384 = vsel %vm168, %v310, 0.0
  %v385 = vadd.f32 %v383, %v384
  %v386 = vsel %vm168, %v311, 0.0
  %v387 = vadd.f32 %v385, %v386
  %v388 = vsel %vm168, %v312, 0.0
  %v389 = vadd.f32 %v387, %v388
  %v390 = vsel %vm168, %v313, 0.0
  %v391 = vadd.f32 %v389, %v390
  %v392 = vsel %vm168, %v314, 0.0
  %v393 = vadd.f32 %v391, %v392
  %v394 = vsel %vm168, %v315, 0.0
  %v395 = vadd.f32 %v393, %v394
  %v396 = vsel %vm168, %v316, 0.0
  %v397 = vadd.f32 %v395, %v396
  %v398 = vsel %vm168, %v317, 0.0
  %v399 = vadd.f32 %v397, %v398
  %v400 = vsel %vm168, %v318, 0.0
  %v401 = vadd.f32 %v399, %v400
  %v402 = vsel %vm168, %v319, 0.0
  %v403 = vadd.f32 %v401, %v402
  %v404 = vsel %vm168, %v320, 0.0
  %v405 = vadd.f32 %v403, %v404
  %v406 = vsel %vm168, %v321, 0.0
  %v407 = vadd.f32 %v405, %v406
  %v408 = vsel %vm168, %v322, 0.0
  %v409 = vadd.f32 %v407, %v408
  %v410 = vsel %vm168, %v323, 0.0
  %v411 = vadd.f32 %v409, %v410
  %v412 = vsel %vm168, %v324, 0.0
  %v413 = vadd.f32 %v411, %v412
  %v414 = vsel %vm168, %v325, 0.0
  %v415 = vadd.f32 %v413, %v414
  %v416 = vsel %vm168, %v326, 0.0
  %v417 = vadd.f32 %v415, %v416
  %v418 = vsel %vm168, %v327, 0.0
  %v419 = vadd.f32 %v417, %v418
  %v420 = vsel %vm168, %v328, 0.0
  %v421 = vadd.f32 %v419, %v420
  %v422 = vsel %vm168, %v329, 0.0
  %v423 = vadd.f32 %v421, %v422
  %v424 = vsel %vm168, %v330, 0.0
  %v425 = vadd.f32 %v423, %v424
  %v426 = vsel %vm168, %v331, 0.0
  %v427 = vadd.f32 %v425, %v426
  %v428 = vsel %vm168, %v332, 0.0
  %v429 = vadd.f32 %v427, %v428
  %v430 = vsel %vm168, %v333, 0.0
  %v431 = vadd.f32 %v429, %v430
  %v432 = vsel %vm168, %v334, 0.0
  %v433 = vadd.f32 %v431, %v432
  %v434 = vsel %vm168, %v335, 0.0
  %v435 = vadd.f32 %v433, %v434
  %v436 = vsel %vm168, %v336, 0.0
  %v437 = vadd.f32 %v435, %v436
  %v438 = vsel %vm168, %v337, 0.0
  %v439 = vadd.f32 %v437, %v438
  %v440 = vsel %vm168, %v338, 0.0
  %v441 = vadd.f32 %v439, %v440
  %v442 = vsel %vm168, %v339, 0.0
  %v443 = vadd.f32 %v441, %v442
  %v444 = vsel %vm168, %v340, 0.0
  %v445 = vadd.f32 %v443, %v444
  %v446 = vsel %vm168, %v341, 0.0
  %v447 = vadd.f32 %v445, %v446
  %v448 = vsel %vm168, %v342, 0.0
  %v449 = vadd.f32 %v447, %v448
  %v450 = vsel %vm168, %v343, 0.0
  %v451 = vadd.f32 %v449, %v450
  %v452 = vsel %vm168, %v344, 0.0
  %v453 = vadd.f32 %v451, %v452
  %v454 = vsel %vm168, %v345, 0.0
  %v455 = vadd.f32 %v453, %v454
  %v456 = vsel %vm168, %v346, 0.0
  %v457 = vadd.f32 %v455, %v456
  %v458 = vsel %vm168, %v347, 0.0
  %v459 = vadd.f32 %v457, %v458
  %v460 = vsel %vm168, %v348, 0.0
  %v461 = vadd.f32 %v459, %v460
  %v462 = vsel %vm168, %v349, 0.0
  %v463 = vadd.f32 %v461, %v462
  %v464 = vsel %vm168, %v350, 0.0
  %v465 = vadd.f32 %v463, %v464
  %v466 = vsel %vm168, %v351, 0.0
  %v467 = vadd.f32 %v465, %v466
  %v468 = vsel %vm168, %v352, 0.0
  %v469 = vadd.f32 %v467, %v468
  %v470 = vsel %vm168, %v353, 0.0
  %v471 = vadd.f32 %v469, %v470
  %v472 = vsel %vm168, %v354, 0.0
  %v473 = vadd.f32 %v471, %v472
  %v474 = vsel %vm168, %v355, 0.0
  %v475 = vadd.f32 %v473, %v474
  %v476 = vsel %vm168, %v356, 0.0
  %v477 = vadd.f32 %v475, %v476
  %v478 = vsel %vm168, %v357, 0.0
  %v479 = vadd.f32 %v477, %v478
  %v480 = vsel %vm168, %v358, 0.0
  %v481 = vadd.f32 %v479, %v480
  %v482 = vsel %vm168, %v359, 0.0
  %v483 = vadd.f32 %v481, %v482
  %v484 = vsel %vm168, %v360, 0.0
  %v485 = vadd.f32 %v483, %v484
  %v486 = vsel %vm168, %v361, 0.0
  %v487 = vadd.f32 %v485, %v486
  %v488 = vsel %vm168, %v362, 0.0
  %v489 = vadd.f32 %v487, %v488
  %v490 = vadd.f32 %v298, %v489
  %491 = vst.msk [vmem:[#allocation3] sm:$0xff] %vm168, %v490
  // Predicated region
  $region10: #{transition_layer_forward.2} parent=0 // pred_check
    %p492 = pneg %p32
  $region11: #{transition_layer_forward.2} parent=0 // pred_check_branch
    %494 = sbr.rel (%p492) target = $region13
  $region12: #{transition_layer_forward.2} parent=0 // pred_region
    %v495 = vld [vmem:[#allocation2] sm:$0xff]
    %v496 = vsel %vm168, %v495, 0.0
    %v497 = vrot.slane %v496, 4
    %v498 = vadd.f32 %v496, %v497
    %v499 = vrot.slane %v498, 2
    %v500 = vadd.f32 %v498, %v499
    %v501 = vrot.slane %v500, 1
    %v502 = vadd.f32 %v500, %v501
    %vm503 = vcmask 516096
    %504 = vst.msk [vmem:[%s1] sm:$0x1] %vm503, %v502
    %v505 = vld [vmem:[#allocation3] sm:$0xff]
    %v506 = vsel %vm168, %v505, 0.0
    %v507 = vrot.slane %v506, 4
    %v508 = vadd.f32 %v506, %v507
    %v509 = vrot.slane %v508, 2
    %v510 = vadd.f32 %v508, %v509
    %v511 = vrot.slane %v510, 1
    %v512 = vadd.f32 %v510, %v511
    %513 = vst.msk [vmem:[%s2] sm:$0x1] %vm503, %v512
  $region13: #{transition_layer_forward.2} parent=0 // pred_fallthru
    _
  // Predicated region
  $region14: #{transition_layer_forward.2} parent=0 // pred_check
    _
  $region15: #{transition_layer_forward.2} parent=0 // pred_check_branch
    %515 = sbr.rel (0) target = $region17
  $region16: #{transition_layer_forward.2} parent=0 // pred_region
    _
  $region17: #{transition_layer_forward.2} parent=0 // pred_fallthru
    _
  // Predicated region
  $region18: #{transition_layer_forward.2} parent=0 // pred_check
    _
  $region19: #{transition_layer_forward.2} parent=0 // pred_check_branch
    %517 = sbr.rel (0) target = $region21
  $region20: #{transition_layer_forward.2} parent=0 // pred_region
    _
  $region21: #{transition_layer_forward.2} parent=0 // pred_fallthru
    _
  // Predicated region
  $region22: #{transition_layer_forward.2} parent=0 // pred_check
    _
  $region23: #{transition_layer_forward.2} parent=0 // pred_check_branch
    %519 = sbr.rel (0) target = $region25
  $region24: #{transition_layer_forward.2} parent=0 // pred_region
    _
  $region25: #{transition_layer_forward.2} parent=0 // pred_fallthru
    _
  // Predicated region
  $region26: #{transition_layer_forward.2} parent=0 // pred_check
    _
  $region27: #{transition_layer_forward.2} parent=0 // pred_check_branch
    %521 = sbr.rel (0) target = $region29
  $region28: #{transition_layer_forward.2} parent=0 // pred_region
    _
  $region29: #{transition_layer_forward.2} parent=0 // pred_fallthru
    _

</llo_original>
